<compile_context>
chip_gen: v7x
topology: tpu7x:2x2x1
jax: 0.10.0
libtpu: 0.0.40
codegen_flags: <defaults>
</compile_context>

<pallas_src>
import jax
import jax.numpy as jnp
from jax.experimental import pallas as pl
from jax.experimental.pallas import tpu as pltpu


def _graph_gen_embedding_kernel(x_ref, w_ref, b_ref, fix_ref, o_ref):
    # x_ref  : (TB, C, TN)  batch tile x node tile (VMEM)
    # w_ref  : (1, C, 1)    Conv1d(kernel=1) weight in native PyTorch layout (VMEM)
    # b_ref  : (1,)         Conv1d bias (SMEM scalar)
    # fix_ref: (1, C, TN)   FixEmbedding tile (VMEM, resident across the batch axis)
    # o_ref  : (TB, C, TN)
    x = x_ref[...]
    w = w_ref[...]                     # (1, C, 1) broadcasts over batch & nodes
    bias = b_ref[0]                    # scalar from SMEM
    fix = fix_ref[...]                 # (1, C, TN) broadcasts over batch

    # Conv1d with kernel size 1 and 1 output channel == weighted channel reduction.
    # Keep it on VPU (mul) + XLU (sublane reduce); HBM DMA is the bottleneck, so these
    # slots are effectively free (do NOT route through the MXU).
    x_e = jnp.sum(x * w, axis=1, keepdims=True) + bias   # (TB, 1, TN)

    o_ref[...] = x + x_e + fix         # broadcast x_e over channels, fix over batch


def _pick_tiles(B, C, N, itemsize, budget_bytes=24 * 1024 * 1024):
    """Pick (TB, TN) block sizes.

    Per-step VMEM (double-buffered) ~ 2 * (x + out) * TB*C*TN + 2 * fix * C*TN
                                    = 2 * (2*TB + 1) * C * TN * itemsize.
    Budget is conservative enough for v7x (64 MiB physical VMEM).
    """
    # Prefer the whole node axis in one lane-dense block if it fits (TB = 1 cost).
    if 2 * 3 * C * N * itemsize <= budget_bytes:
        tn = N
        # Grow the batch block to fill the remaining budget.
        tb = (budget_bytes // (2 * C * N * itemsize) - 1) // 2
        tb = int(max(1, min(B, tb)))
        return tb, tn
    # Node axis too large: single batch element per block, largest 128-aligned TN.
    cap = budget_bytes // (6 * C * itemsize)
    tn = max(128, (cap // 128) * 128)
    tn = int(min(tn, N))
    return 1, tn
    # Ragged trailing node/batch tiles are fine: the op is elementwise over nodes and
    # batch (the reduction is over the always-complete channel axis), so padded lanes
    # never pollute valid outputs and their writes are discarded.


def graph_gen_embedding(x, conv_w_pt, conv_b_pt, fix_embedding, *, tile_b=None, tile_n=None):
    """x: (B, C, N); conv_w_pt: (1, C, 1); conv_b_pt: (1,); fix_embedding: (1, C, N)."""
    B, C, N = x.shape
    itemsize = jnp.dtype(x.dtype).itemsize

    tb_auto, tn_auto = _pick_tiles(B, C, N, itemsize)
    tb = tile_b if tile_b is not None else tb_auto
    tn = tile_n if tile_n is not None else tn_auto

    num_n = pl.cdiv(N, tn)
    num_b = pl.cdiv(B, tb)

    # Grid: node tiles OUTER, batch tiles INNER (fastest-varying) -> the FixEmbedding
    # block index is constant across consecutive steps and stays resident in VMEM.
    grid = (num_n, num_b)

    conv_b = conv_b_pt.reshape(1)   # scalar bias -> SMEM

    return pl.pallas_call(
        _graph_gen_embedding_kernel,
        out_shape=jax.ShapeDtypeStruct((B, C, N), x.dtype),
        grid=grid,
        in_specs=[
            # x: per (node-tile, batch-tile) block of shape (tb, C, tn)
            pl.BlockSpec((tb, C, tn), lambda j, b: (b, 0, j)),
            # Conv1d weight in native (1, C, 1) layout, fetched once
            pl.BlockSpec((1, C, 1), lambda j, b: (0, 0, 0)),
            # Conv1d bias: scalar in SMEM (avoids a padded (8,128) VMEM tile + DMA)
            pl.BlockSpec(memory_space=pltpu.MemorySpace.SMEM),
            # FixEmbedding: block index independent of the (inner) batch axis -> resident
            pl.BlockSpec((1, C, tn), lambda j, b: (0, 0, j)),
        ],
        out_specs=pl.BlockSpec((tb, C, tn), lambda j, b: (b, 0, j)),
        compiler_params=pltpu.CompilerParams(
            dimension_semantics=("parallel", "parallel"),
            vmem_limit_bytes=48 * 1024 * 1024,
        ),
    )(x, conv_w_pt, conv_b, fix_embedding)


def _reference(x, conv_w_pt, conv_b_pt, fix_embedding):
    C = x.shape[1]
    x_e = (jnp.sum(x * conv_w_pt.reshape(1, C, 1), axis=1, keepdims=True)
           + conv_b_pt.reshape(1, 1, 1))
    return x + x_e + fix_embedding


if __name__ == "__main__":
    key = jax.random.PRNGKey(0)

    # Case 1: lane-aligned node axis (c_in == c_out required by the module's broadcast).
    B, C, N = 2, 8, 128
    k_x, k_fix, k_w, k_b, key = jax.random.split(key, 5)
    x = jax.random.normal(k_x, (B, C, N), dtype=jnp.float32)
    fix_embedding = jax.random.normal(k_fix, (1, C, N), dtype=jnp.float32)   # (1, c_out, n_nodes)
    conv_w_pt = jax.random.normal(k_w, (1, C, 1), dtype=jnp.float32)         # PyTorch Conv1d weight layout
    conv_b_pt = jax.random.normal(k_b, (1,), dtype=jnp.float32)              # Conv1d bias

    out = jax.block_until_ready(graph_gen_embedding(x, conv_w_pt, conv_b_pt, fix_embedding))
    ref = _reference(x, conv_w_pt, conv_b_pt, fix_embedding)
    assert out.shape == (B, C, N)
    assert jnp.allclose(out, ref, atol=1e-5, rtol=1e-5)

    # Case 2: non-128-multiple node axis (whole-N block, so no (8,128) issue).
    B2, C2, N2 = 3, 4, 200
    k_x2, k_fix2, k_w2, k_b2, key = jax.random.split(key, 5)
    x2 = jax.random.normal(k_x2, (B2, C2, N2), dtype=jnp.float32)
    fix2 = jax.random.normal(k_fix2, (1, C2, N2), dtype=jnp.float32)
    w2 = jax.random.normal(k_w2, (1, C2, 1), dtype=jnp.float32)
    b2 = jax.random.normal(k_b2, (1,), dtype=jnp.float32)

    out2 = jax.block_until_ready(graph_gen_embedding(x2, w2, b2, fix2))
    ref2 = _reference(x2, w2, b2, fix2)
    assert out2.shape == (B2, C2, N2)
    assert jnp.allclose(out2, ref2, atol=1e-5, rtol=1e-5)

    print("KERNEL_OK")
</pallas_src>

<mosaic_0001>
module attributes {stable_mosaic.version = 11 : i64} {
  func.func @_graph_gen_embedding_kernel(%arg0: i32, %arg1: i32, %arg2: memref<2x8x128xf32, #tpu.memory_space<vmem>>, %arg3: memref<1x8x1xf32, #tpu.memory_space<vmem>>, %arg4: memref<1xf32, #tpu.memory_space<smem>>, %arg5: memref<1x8x128xf32, #tpu.memory_space<vmem>>, %arg6: memref<2x8x128xf32, #tpu.memory_space<vmem>>) attributes {dimension_semantics = [#tpu.dimension_semantics<parallel>, #tpu.dimension_semantics<parallel>], iteration_bounds = array<i64: 1, 1>, scalar_prefetch = 0 : i64, scratch_operands = 0 : i64, tpu.core_type = #tpu.core_type<tc>, window_params = [{transform_indices = @transform_0, window_bounds = array<i64: 2, 8, 128>}, {pipeline_mode = #tpu.pipeline_mode<synchronous>, transform_indices = @transform_1, window_bounds = array<i64: 1, 8, 1>}, {transform_indices = @transform_2, window_bounds = array<i64: 1>}, {transform_indices = @transform_3, window_bounds = array<i64: 1, 8, 128>}, {transform_indices = @transform_4, window_bounds = array<i64: 2, 8, 128>}]} {
    %c0 = arith.constant 0 : index
    %c0_0 = arith.constant 0 : index
    %c0_1 = arith.constant 0 : index
    %0 = vector.load %arg2[%c0, %c0_0, %c0_1] : memref<2x8x128xf32, #tpu.memory_space<vmem>>, vector<2x8x128xf32>
    %c0_2 = arith.constant 0 : index
    %c0_3 = arith.constant 0 : index
    %c0_4 = arith.constant 0 : index
    %1 = vector.load %arg3[%c0_2, %c0_3, %c0_4] : memref<1x8x1xf32, #tpu.memory_space<vmem>>, vector<1x8x1xf32>
    %c0_5 = arith.constant 0 : index
    %2 = memref.load %arg4[%c0_5] : memref<1xf32, #tpu.memory_space<smem>>
    %c0_6 = arith.constant 0 : index
    %c0_7 = arith.constant 0 : index
    %c0_8 = arith.constant 0 : index
    %3 = vector.load %arg5[%c0_6, %c0_7, %c0_8] : memref<1x8x128xf32, #tpu.memory_space<vmem>>, vector<1x8x128xf32>
    %4 = vector.broadcast %1 : vector<1x8x1xf32> to vector<2x8x128xf32>
    %5 = arith.mulf %0, %4 : vector<2x8x128xf32>
    %cst = arith.constant dense<0.000000e+00> : vector<2x128xf32>
    %6 = vector.multi_reduction <add>, %5, %cst [1] : vector<2x8x128xf32> to vector<2x128xf32>
    %7 = vector.shape_cast %6 : vector<2x128xf32> to vector<2x1x128xf32>
    %8 = vector.broadcast %2 : f32 to vector<2x1x128xf32>
    %9 = arith.addf %7, %8 : vector<2x1x128xf32>
    %10 = vector.broadcast %9 : vector<2x1x128xf32> to vector<2x8x128xf32>
    %11 = arith.addf %0, %10 : vector<2x8x128xf32>
    %12 = vector.broadcast %3 : vector<1x8x128xf32> to vector<2x8x128xf32>
    %13 = arith.addf %11, %12 : vector<2x8x128xf32>
    %c0_9 = arith.constant 0 : index
    %c0_10 = arith.constant 0 : index
    %c0_11 = arith.constant 0 : index
    %14 = vector.load %arg6[%c0_9, %c0_10, %c0_11] : memref<2x8x128xf32, #tpu.memory_space<vmem>>, vector<2x8x128xf32>
    tpu.vector_store %arg6[%c0_9, %c0_10, %c0_11], %13 {strides = array<i32>} : memref<2x8x128xf32, #tpu.memory_space<vmem>>, vector<2x8x128xf32>,
    return
  }
  func.func @transform_0(%arg0: i32, %arg1: i32) -> (i32, i32, i32) {
    %c0_i32 = arith.constant 0 : i32
    %c0_i32_0 = arith.constant 0 : i32
    return %arg1, %c0_i32, %arg0 : i32, i32, i32
  }
  func.func @transform_1(%arg0: i32, %arg1: i32) -> (i32, i32, i32) {
    %c0_i32 = arith.constant 0 : i32
    %c0_i32_0 = arith.constant 0 : i32
    %c0_i32_1 = arith.constant 0 : i32
    %c0_i32_2 = arith.constant 0 : i32
    return %c0_i32, %c0_i32_0, %c0_i32_1 : i32, i32, i32
  }
  func.func @transform_2(%arg0: i32, %arg1: i32) -> i32 {
    %c0_i32 = arith.constant 0 : i32
    %c0_i32_0 = arith.constant 0 : i32
    return %c0_i32 : i32
  }
  func.func @transform_3(%arg0: i32, %arg1: i32) -> (i32, i32, i32) {
    %c0_i32 = arith.constant 0 : i32
    %c0_i32_0 = arith.constant 0 : i32
    %c0_i32_1 = arith.constant 0 : i32
    return %c0_i32, %c0_i32_0, %arg0 : i32, i32, i32
  }
  func.func @transform_4(%arg0: i32, %arg1: i32) -> (i32, i32, i32) {
    %c0_i32 = arith.constant 0 : i32
    %c0_i32_0 = arith.constant 0 : i32
    return %arg1, %c0_i32, %arg0 : i32, i32, i32
  }
}

</mosaic_0001>

<llo_original>
// kernel: tpu_custom_call.1
$region0: #{tpu_custom_call.1}
  #allocation0 [shape = 'u32[]', space=smem, size = 0x4, offset = 0x4, fixed_abs, tag = 'smem constant byte address 0x4 - core index']
  #allocation1 [shape = 'u32[144,128]{1,0:T(1,128)}', space=vmem, size = 0x12000, scoped, tag = 'internal scratch']
  #allocation2 [shape = 'f32[1]{0:T(128)S(6)}', space=smem, size = 0x200, scoped, tag = 'scoped memory for tpu_custom_call.1']
  %s0 = inlined_call_operand.hbm [shape: f32[2,8,128], index: 0, kind: input, shape index: {}]
  %s1 = inlined_call_operand.vmem [shape: f32[1,8,1], index: 1, kind: input, shape index: {}]
  %s2 = inlined_call_operand.<no memory space> [shape: f32[1], index: 2, kind: input, shape index: {}]
  %s3 = inlined_call_operand.vmem [shape: f32[1,8,128], index: 3, kind: input, shape index: {}]
  %s4 = inlined_call_operand.hbm [shape: f32[2,8,128], index: 4, kind: output, shape index: {}]
  %s5 = sld [smem:[#allocation0]]
  $region30: #{tpu_custom_call.1} parent=0
    _
  %s7 = ssub.s32 1, %s5
  %s8 = scalar_select 0, %s7, %s5
  %9 = sst [smem:[#allocation2]] %s2
  $region1: #{tpu_custom_call.1} parent=0
    #allocation3 [shape = 'u8[8192]{0}', space=vmem, size = 0x2000, scoped, tag = 'input window, operand 0, single buffered']
    #allocation4 [shape = 's32[1]{0}', space=sflag, size = 0x4, scoped, tag = 'scoped memory for tpu_custom_call.1']
    #allocation5 [shape = 's32[1]{0}', space=sflag, size = 0x4, scoped, tag = 'scoped memory for tpu_custom_call.1']
    #allocation6 [shape = 'u8[8192]{0}', space=vmem, size = 0x2000, scoped, tag = 'output window, operand 0, single buffered']
    %10 = vsyncpa [#allocation4], 0
    %11 = vsyncpa [#allocation5], 0
    // Predicated region
    $region2: #{tpu_custom_call.1} parent=1 // pred_check
      _
    $region3: #{tpu_custom_call.1} parent=1 // pred_check_branch
      %13 = sbr.rel (0) target = $region5
    $region4: #{tpu_custom_call.1} parent=1 // pred_region
      %s15 = ssub.s32 256, 256
      %16 = vsyncadd [#allocation4], %s15
      %s17 = sshll.u32 [#allocation3], 4
      %s18 = int_to_ptr.vmem [resolvable:$true] %s17
      %23 = dma.hbm_to_vmem [thread:$0]  %s0, 256, %s18, [#allocation4], 128, 128, 8
    $region5: #{tpu_custom_call.1} parent=1 // pred_fallthru
      _
    // Predicated region
    $region6: #{tpu_custom_call.1} parent=1 // pred_check
      _
    $region7: #{tpu_custom_call.1} parent=1 // pred_check_branch
      %25 = sbr.rel (0) target = $region9
    $region8: #{tpu_custom_call.1} parent=1 // pred_region
      _
    $region9: #{tpu_custom_call.1} parent=1 // pred_fallthru
      _
    // Predicated region
    $region10: #{tpu_custom_call.1} parent=1 // pred_check
      _
    $region11: #{tpu_custom_call.1} parent=1 // pred_check_branch
      %27 = sbr.rel (0) target = $region13
    $region12: #{tpu_custom_call.1} parent=1 // pred_region
      _
    $region13: #{tpu_custom_call.1} parent=1 // pred_fallthru
      _
    // Predicated region
    $region14: #{tpu_custom_call.1} parent=1 // pred_check
      _
    $region15: #{tpu_custom_call.1} parent=1 // pred_check_branch
      %29 = sbr.rel (0) target = $region17
    $region16: #{tpu_custom_call.1} parent=1 // pred_region
      _
    $region17: #{tpu_custom_call.1} parent=1 // pred_fallthru
      _
    // Predicated region
    $region18: #{tpu_custom_call.1} parent=1 // pred_check
      _
    $region19: #{tpu_custom_call.1} parent=1 // pred_check_branch
      %31 = sbr.rel (0) target = $region21
    $region20: #{tpu_custom_call.1} parent=1 // pred_region
      %32 = dma.done [#allocation4], 256
    $region21: #{tpu_custom_call.1} parent=1 // pred_fallthru
      _
    %v33 = vld [vmem:[#allocation3] sm:$0xff]
    %v34 = vld [vmem:[#allocation3 + $0x8] sm:$0xff]
    %v35 = vld [vmem:[%s1] sm:$0xff]
    %s36 = sld [smem:[#allocation2]]
    %v37 = vld [vmem:[%s3] sm:$0xff]
    %39 = vset.pattern.permute.xlu0 0
    %40 = vperm.xlu0 %39, %v35
    %v41 = vpop.permute.xlu0 %40
    %v43 = vmul.f32 %v33, %v41
    %v44 = vmul.f32 %v34, %v41
    %v45 = vrot.slane %v43, 4
    %v46 = vadd.f32 %v43, %v45
    %v47 = vrot.slane %v46, 2
    %v48 = vadd.f32 %v46, %v47
    %v49 = vrot.slane %v48, 1
    %v50 = vadd.f32 %v48, %v49
    %v51 = vrot.slane %v44, 4
    %v52 = vadd.f32 %v44, %v51
    %v53 = vrot.slane %v52, 2
    %v54 = vadd.f32 %v52, %v53
    %v55 = vrot.slane %v54, 1
    %v56 = vadd.f32 %v54, %v55
    %v57 = vstv %s36
    %v58 = vadd.f32 %v50, %v57
    %v59 = vadd.f32 %v56, %v57
    %v60 = vadd.f32 %v33, %v58
    %v61 = vadd.f32 %v34, %v59
    %v62 = vadd.f32 %v60, %v37
    %v63 = vadd.f32 %v61, %v37
    %64 = vst [vmem:[#allocation6] sm:$0xff] %v62
    %65 = vst [vmem:[#allocation6 + $0x8] sm:$0xff] %v63
    // Predicated region
    $region22: #{tpu_custom_call.1} parent=1 // pred_check
      _
    $region23: #{tpu_custom_call.1} parent=1 // pred_check_branch
      %67 = sbr.rel (0) target = $region25
    $region24: #{tpu_custom_call.1} parent=1 // pred_region
      %s69 = ssub.s32 256, 256
      %70 = vsyncadd [#allocation5], %s69
      %s71 = sshll.u32 [#allocation6], 4
      %s72 = int_to_ptr.vmem [resolvable:$true] %s71
      %77 = dma.vmem_to_hbm [thread:$0]  %s72, 256, %s4, [#allocation5], 128, 128, 8
    $region25: #{tpu_custom_call.1} parent=1 // pred_fallthru
      _
    // Predicated region
    $region26: #{tpu_custom_call.1} parent=1 // pred_check
      _
    $region27: #{tpu_custom_call.1} parent=1 // pred_check_branch
      %79 = sbr.rel (0) target = $region29
    $region28: #{tpu_custom_call.1} parent=1 // pred_region
      %80 = dma.done [#allocation5], 256
    $region29: #{tpu_custom_call.1} parent=1 // pred_fallthru
      _
    %81 = vsyncpa [#allocation4], 1
    %82 = vsyncpa [#allocation5], 1

</llo_original>
